<compile_context>
chip_gen: v6e
topology: v6e:2x2x1
jax: 0.10.0
libtpu: 0.0.40
codegen_flags: <defaults>
</compile_context>

<pallas_src>
import functools
import math

import jax
import jax.numpy as jnp
from jax.experimental import pallas as pl
from jax.experimental.pallas import tpu as pltpu

# Scoped-VMEM budget: v5e default is 16 MiB, v6e/v7x 32 MiB; our tiles use only
# a few MiB, but set it explicitly so larger tile targets stay legal everywhere.
_VMEM_LIMIT_BYTES = 32 * 1024 * 1024


# ----------------------------------------------------------------------------
# Tile-size helper
# ----------------------------------------------------------------------------
def _pick_tile(dim, target, align):
    """Largest tile <= target that exactly divides `dim` and is a multiple of
    `align`; falls back to the full dim (always a legal block shape)."""
    # TODO(synk): for very long dims with no aligned divisor <= target this
    # falls back to the full dim; pad the sequence instead if that overflows VMEM.
    if dim <= target:
        return dim
    t = (target // align) * align
    while t >= align:
        if dim % t == 0:
            return t
        t -= align
    return dim


def _sublane_align(dtype):
    return 16 if jnp.dtype(dtype).itemsize == 2 else 8


# ----------------------------------------------------------------------------
# Kernel 1: tiled dense layer  o = x @ W + b   (W stored as (in, out))
# ----------------------------------------------------------------------------
def _linear_kernel(x_ref, w_ref, b_ref, o_ref, acc_ref):
    k = pl.program_id(2)

    @pl.when(k == 0)
    def _():
        acc_ref[...] = jnp.zeros_like(acc_ref)

    # Operands stay in their native (bf16) dtype; accumulate in f32 on the MXU.
    acc_ref[...] += jnp.dot(
        x_ref[...], w_ref[...], preferred_element_type=jnp.float32
    )

    @pl.when(k == pl.num_programs(2) - 1)
    def _():
        o_ref[...] = (acc_ref[...] + b_ref[...].astype(jnp.float32)).astype(
            o_ref.dtype
        )


def pallas_linear(x, w, b, *, out_dtype=None, tm_target=512, tn_target=512,
                  tk_target=512):
    """x: (M, K), w: (K, N), b: (N,) -> (M, N), tiled + pipelined."""
    M, K = x.shape
    Kw, N = w.shape
    assert K == Kw, "weight shape mismatch"
    out_dtype = out_dtype if out_dtype is not None else x.dtype

    tm = _pick_tile(M, tm_target, _sublane_align(x.dtype))  # sublane dim of x / out
    tn = _pick_tile(N, tn_target, 128)                      # lane dim of w / out
    tk = _pick_tile(K, tk_target, 128)                      # contraction dim

    grid = (M // tm, N // tn, K // tk)
    itemsize = jnp.dtype(x.dtype).itemsize

    return pl.pallas_call(
        _linear_kernel,
        out_shape=jax.ShapeDtypeStruct((M, N), out_dtype),
        grid_spec=pltpu.PrefetchScalarGridSpec(
            num_scalar_prefetch=0,
            grid=grid,
            in_specs=[
                pl.BlockSpec((tm, tk), lambda i, j, kk: (i, kk)),
                pl.BlockSpec((tk, tn), lambda i, j, kk: (kk, j)),
                pl.BlockSpec((1, tn), lambda i, j, kk: (0, j)),
            ],
            out_specs=pl.BlockSpec((tm, tn), lambda i, j, kk: (i, j)),
            scratch_shapes=[pltpu.VMEM((tm, tn), jnp.float32)],
        ),
        compiler_params=pltpu.CompilerParams(
            dimension_semantics=("parallel", "parallel", "arbitrary"),
            vmem_limit_bytes=_VMEM_LIMIT_BYTES,
        ),
        cost_estimate=pl.CostEstimate(
            flops=2 * M * N * K,
            transcendentals=0,
            bytes_accessed=(M * K + K * N + M * N) * itemsize + 4 * N,
        ),
    )(x, w, b.reshape(1, N))


# ----------------------------------------------------------------------------
# Kernel 2: flash attention, all heads per program, head-contiguous output
# ----------------------------------------------------------------------------
def _flash_mha_kernel(q_ref, k_ref, v_ref, o_ref, m_sc, l_sc, acc_sc,
                      *, n_heads, d_k):
    kv = pl.program_id(2)

    @pl.when(kv == 0)
    def _():
        m_sc[...] = jnp.full_like(m_sc, -jnp.inf)
        l_sc[...] = jnp.zeros_like(l_sc)
        acc_sc[...] = jnp.zeros_like(acc_sc)

    # Lane-dense (tq, D) / (tk, D) slabs holding every head. q is already
    # pre-scaled by 1/sqrt(d_k) (folded into w_q / b_q at param-prep time).
    q = q_ref[0]
    k = k_ref[0]
    v = v_ref[0]

    # Static per-head loop: d_k-wide lane slices of the loaded slabs.
    for h in range(n_heads):
        lo = h * d_k
        qh = q[:, lo:lo + d_k]
        kh = k[:, lo:lo + d_k]
        vh = v[:, lo:lo + d_k]

        # (tq, tk) scores in f32; contraction over the last dims (no k.T copy).
        s = jnp.einsum("qd,kd->qk", qh, kh, preferred_element_type=jnp.float32)

        m_prev = m_sc[h]                                   # (tq, 1) f32
        m_new = jnp.maximum(m_prev, s.max(-1, keepdims=True))
        alpha = jnp.exp(m_prev - m_new)                    # f32 softmax math
        p = jnp.exp(s - m_new)

        l_sc[h] = alpha * l_sc[h] + p.sum(-1, keepdims=True)
        acc_sc[h] = alpha * acc_sc[h] + jnp.dot(
            p.astype(vh.dtype), vh, preferred_element_type=jnp.float32
        )
        m_sc[h] = m_new

    @pl.when(kv == pl.num_programs(2) - 1)
    def _():
        # Head-contiguous, lane-dense (tq, D) store. Exact divide (runs once
        # per output tile - negligible cost, avoids approx-reciprocal error).
        outs = [acc_sc[h] / l_sc[h] for h in range(n_heads)]
        o_ref[0] = jnp.concatenate(outs, axis=-1).astype(o_ref.dtype)


def pallas_flash_mha(q_arr, k_arr, v_arr, *, n_heads, d_k,
                     q_blk=0, k_blk=0, v_blk=0,
                     tq_target=256, tk_target=256, out_dtype=None):
    """q_arr/k_arr/v_arr: (B, S, D*m) with the relevant D-wide slab selected by
    the *_blk last-dim block index (lets the fused (B, S, 3D) QKV output be
    consumed directly).  Returns head-contiguous (B, Sq, D)."""
    B, Sq, _ = q_arr.shape
    Sk = k_arr.shape[1]
    D = n_heads * d_k
    out_dtype = out_dtype if out_dtype is not None else q_arr.dtype

    align = _sublane_align(q_arr.dtype)
    # tq/tk = 256: 256-deep MXU alignment on v6e/v7x; on v5e 128 already
    # saturates the MXU but 256 just means fewer grid steps (VMEM is tiny).
    tq = _pick_tile(Sq, tq_target, align)
    tk = _pick_tile(Sk, tk_target, align)

    # Grid: (B, q-tiles) are "parallel" (v7x shards them across its 2 TCs -
    # keep their product even/balanced), kv axis is the reduction -> last,
    # "arbitrary".
    grid = (B, Sq // tq, Sk // tk)
    itemsize = jnp.dtype(q_arr.dtype).itemsize
    kernel = functools.partial(_flash_mha_kernel, n_heads=n_heads, d_k=d_k)

    return pl.pallas_call(
        kernel,
        out_shape=jax.ShapeDtypeStruct((B, Sq, D), out_dtype),
        grid_spec=pltpu.PrefetchScalarGridSpec(
            num_scalar_prefetch=0,
            grid=grid,
            in_specs=[
                pl.BlockSpec((1, tq, D), lambda b, qi, ki: (b, qi, q_blk)),
                pl.BlockSpec((1, tk, D), lambda b, qi, ki: (b, ki, k_blk)),
                pl.BlockSpec((1, tk, D), lambda b, qi, ki: (b, ki, v_blk)),
            ],
            out_specs=pl.BlockSpec((1, tq, D), lambda b, qi, ki: (b, qi, 0)),
            scratch_shapes=[
                pltpu.VMEM((n_heads, tq, 1), jnp.float32),    # running max m
                pltpu.VMEM((n_heads, tq, 1), jnp.float32),    # running denom l
                pltpu.VMEM((n_heads, tq, d_k), jnp.float32),  # output accumulator
            ],
        ),
        compiler_params=pltpu.CompilerParams(
            dimension_semantics=("parallel", "parallel", "arbitrary"),
            vmem_limit_bytes=_VMEM_LIMIT_BYTES,
        ),
        cost_estimate=pl.CostEstimate(
            flops=4 * B * Sq * Sk * D,
            transcendentals=B * n_heads * Sq * Sk,
            bytes_accessed=(2 * B * Sq * D + 2 * B * Sk * D * (Sq // tq)) * itemsize,
        ),
    )(q_arr, k_arr, v_arr)


# ----------------------------------------------------------------------------
# Parameters
# ----------------------------------------------------------------------------
def init_mha_params(key, d_model):
    """Deterministic init matching nn.Linear default (uniform +-1/sqrt(fan_in)).
    Weights stored as (in, out)."""
    bound = 1.0 / math.sqrt(d_model)
    keys = jax.random.split(key, 8)
    names = ["w_q", "w_k", "w_v", "fc"]
    params = {}
    for i, name in enumerate(names):
        w = jax.random.uniform(
            keys[2 * i], (d_model, d_model), jnp.float32, -bound, bound
        )
        b = jax.random.uniform(keys[2 * i + 1], (d_model,), jnp.float32, -bound, bound)
        params[name] = (w, b)
    return params


def prepare_mha_params(params, d_model, n_heads, *,
                       compute_dtype=jnp.bfloat16, out_dtype=jnp.float32):
    """One-time prep (call once, outside the forward): fold 1/sqrt(d_k) into
    w_q/b_q, fuse the QKV weights into a single (D, 3D) matrix, and cast
    weights to the bf16 compute dtype (biases stay f32)."""
    assert d_model % n_heads == 0
    d_k = d_model // n_heads
    scale_inv = 1.0 / math.sqrt(d_k)

    w_q, b_q = params["w_q"]
    w_q = w_q * scale_inv
    b_q = b_q * scale_inv
    w_k, b_k = params["w_k"]
    w_v, b_v = params["w_v"]
    w_fc, b_fc = params["fc"]

    return dict(
        compute_dtype=compute_dtype,
        out_dtype=out_dtype,
        w_qkv=jnp.concatenate([w_q, w_k, w_v], axis=1).astype(compute_dtype),
        b_qkv=jnp.concatenate([b_q, b_k, b_v], axis=0).astype(jnp.float32),
        w_q=w_q.astype(compute_dtype), b_q=b_q.astype(jnp.float32),
        w_k=w_k.astype(compute_dtype), b_k=b_k.astype(jnp.float32),
        w_v=w_v.astype(compute_dtype), b_v=b_v.astype(jnp.float32),
        w_fc=w_fc.astype(compute_dtype), b_fc=b_fc.astype(jnp.float32),
    )


# ----------------------------------------------------------------------------
# Forward pass
# ----------------------------------------------------------------------------
def multi_head_attention(prepared, q, k, v, n_heads):
    B, Sq, D = q.shape
    d_k = D // n_heads
    cdt = prepared["compute_dtype"]

    if q is k and k is v:
        # Self-attention: one fused (D, 3D) projection; the flash kernel reads
        # its Q/K/V slabs straight out of the (B, S, 3D) result via last-dim
        # block indices 0/1/2 (no splits / copies).
        x2 = q.reshape(B * Sq, D).astype(cdt)
        qkv = pallas_linear(x2, prepared["w_qkv"], prepared["b_qkv"], out_dtype=cdt)
        if D % 128 == 0:
            qkv3 = qkv.reshape(B, Sq, 3 * D)
            attn = pallas_flash_mha(
                qkv3, qkv3, qkv3, n_heads=n_heads, d_k=d_k,
                q_blk=0, k_blk=1, v_blk=2, out_dtype=cdt)
        else:
            # Lane width < 128: sub-width block offsets are not legal, fall
            # back to explicit slices of the fused projection output.
            q_p = qkv[:, :D].reshape(B, Sq, D)
            k_p = qkv[:, D:2 * D].reshape(B, Sq, D)
            v_p = qkv[:, 2 * D:].reshape(B, Sq, D)
            attn = pallas_flash_mha(q_p, k_p, v_p, n_heads=n_heads, d_k=d_k,
                                    out_dtype=cdt)
    else:
        Sk = k.shape[1]
        q_p = pallas_linear(q.reshape(B * Sq, D).astype(cdt),
                            prepared["w_q"], prepared["b_q"], out_dtype=cdt
                            ).reshape(B, Sq, D)
        k_p = pallas_linear(k.reshape(B * Sk, D).astype(cdt),
                            prepared["w_k"], prepared["b_k"], out_dtype=cdt
                            ).reshape(B, Sk, D)
        v_p = pallas_linear(v.reshape(B * Sk, D).astype(cdt),
                            prepared["w_v"], prepared["b_v"], out_dtype=cdt
                            ).reshape(B, Sk, D)
        attn = pallas_flash_mha(q_p, k_p, v_p, n_heads=n_heads, d_k=d_k,
                                out_dtype=cdt)

    # attn is already head-contiguous (B, Sq, D): reshape is free, feed fc.
    out = pallas_linear(attn.reshape(B * Sq, D), prepared["w_fc"],
                        prepared["b_fc"], out_dtype=prepared["out_dtype"])
    return out.reshape(B, Sq, D)


# ----------------------------------------------------------------------------
# Reference (pure JAX, f32) for sanity checking
# ----------------------------------------------------------------------------
def reference_mha(params, q, k, v, n_heads):
    B, S, D = q.shape
    d_k = D // n_heads
    scale = math.sqrt(d_k)

    def lin(x, wb):
        w, b = wb
        return x @ w + b

    def split(x):
        return x.reshape(B, -1, n_heads, d_k).transpose(0, 2, 1, 3)

    qh = split(lin(q, params["w_q"]))
    kh = split(lin(k, params["w_k"]))
    vh = split(lin(v, params["w_v"]))
    scores = jnp.einsum("bhqd,bhkd->bhqk", qh, kh) / scale
    attn = jax.nn.softmax(scores, axis=-1)
    out = jnp.einsum("bhqk,bhkd->bhqd", attn, vh)
    out = out.transpose(0, 2, 1, 3).reshape(B, -1, D)
    return lin(out, params["fc"])


if __name__ == "__main__":
    B, S, D, H = 2, 16, 128, 4

    key = jax.random.PRNGKey(0)
    kp, kx, kq, kk, kv = jax.random.split(key, 5)
    params = init_mha_params(kp, D)
    prepared = prepare_mha_params(params, D, H)   # bf16 compute, f32 output

    # bf16 matmul operands -> tolerance sized for bf16 rounding noise.
    TOL = dict(atol=3e-2, rtol=3e-2)

    # Self-attention (fused QKV projection + in-place Q/K/V slab reads).
    x = jax.random.normal(kx, (B, S, D), jnp.float32)
    out_self = jax.block_until_ready(multi_head_attention(prepared, x, x, x, H))
    ref_self = reference_mha(params, x, x, x, H)
    assert out_self.shape == (B, S, D)
    assert out_self.dtype == jnp.float32
    assert jnp.allclose(out_self, ref_self, **TOL), "self-attention mismatch vs reference"

    # Cross-attention (separate projection path).
    q = jax.random.normal(kq, (B, S, D), jnp.float32)
    k = jax.random.normal(kk, (B, S, D), jnp.float32)
    v = jax.random.normal(kv, (B, S, D), jnp.float32)
    out_x = jax.block_until_ready(multi_head_attention(prepared, q, k, v, H))
    ref_x = reference_mha(params, q, k, v, H)
    assert jnp.allclose(out_x, ref_x, **TOL), "cross-attention mismatch vs reference"

    print("KERNEL_OK")
</pallas_src>

<mosaic_0001>
module attributes {stable_mosaic.version = 11 : i64} {
  func.func @_linear_kernel(%arg0: i32, %arg1: i32, %arg2: i32, %arg3: memref<32x128xbf16, #tpu.memory_space<vmem>>, %arg4: memref<128x384xbf16, #tpu.memory_space<vmem>>, %arg5: memref<1x384xf32, #tpu.memory_space<vmem>>, %arg6: memref<32x384xbf16, #tpu.memory_space<vmem>>, %arg7: memref<32x384xf32, #tpu.memory_space<vmem>>) attributes {dimension_semantics = [#tpu.dimension_semantics<parallel>, #tpu.dimension_semantics<parallel>, #tpu.dimension_semantics<arbitrary>], iteration_bounds = array<i64: 1, 1, 1>, scalar_prefetch = 0 : i64, scratch_operands = 1 : i64, tpu.core_type = #tpu.core_type<tc>, window_params = [{transform_indices = @transform_0, window_bounds = array<i64: 32, 128>}, {transform_indices = @transform_1, window_bounds = array<i64: 128, 384>}, {transform_indices = @transform_2, window_bounds = array<i64: 1, 384>}, {transform_indices = @transform_3, window_bounds = array<i64: 32, 384>}]} {
    %c0_i32 = arith.constant 0 : i32
    %0 = arith.cmpi eq, %arg2, %c0_i32 : i32
    %1 = arith.extui %0 : i1 to i32
    %c0_i32_0 = arith.constant 0 : i32
    %2 = arith.cmpi ne, %1, %c0_i32_0 : i32
    scf.if %2 {
      %cst_10 = arith.constant 0.000000e+00 : f32
      %12 = vector.broadcast %cst_10 : f32 to vector<32x384xf32>
      %c0_11 = arith.constant 0 : index
      %c0_12 = arith.constant 0 : index
      %13 = vector.load %arg7[%c0_11, %c0_12] : memref<32x384xf32, #tpu.memory_space<vmem>>, vector<32x384xf32>
      tpu.vector_store %arg7[%c0_11, %c0_12], %12 {strides = array<i32>} : memref<32x384xf32, #tpu.memory_space<vmem>>, vector<32x384xf32>,
    } else {
    }
    %c0 = arith.constant 0 : index
    %c0_1 = arith.constant 0 : index
    %3 = vector.load %arg7[%c0, %c0_1] : memref<32x384xf32, #tpu.memory_space<vmem>>, vector<32x384xf32>
    %c0_2 = arith.constant 0 : index
    %c0_3 = arith.constant 0 : index
    %4 = vector.load %arg3[%c0_2, %c0_3] : memref<32x128xbf16, #tpu.memory_space<vmem>>, vector<32x128xbf16>
    %c0_4 = arith.constant 0 : index
    %c0_5 = arith.constant 0 : index
    %5 = vector.load %arg4[%c0_4, %c0_5] : memref<128x384xbf16, #tpu.memory_space<vmem>>, vector<128x384xbf16>
    %cst = arith.constant dense<0.000000e+00> : vector<32x384xf32>
    %6 = tpu.matmul %4, %5, %cst {dimension_numbers = #tpu.dot_dimension_numbers<[1], [0], [0], [1], [0, 0, 1, 1], [], []>} : vector<32x128xbf16>, vector<128x384xbf16>, vector<32x384xf32> -> vector<32x384xf32>
    %7 = arith.addf %3, %6 : vector<32x384xf32>
    %c0_6 = arith.constant 0 : index
    %c0_7 = arith.constant 0 : index
    %8 = vector.load %arg7[%c0_6, %c0_7] : memref<32x384xf32, #tpu.memory_space<vmem>>, vector<32x384xf32>
    tpu.vector_store %arg7[%c0_6, %c0_7], %7 {strides = array<i32>} : memref<32x384xf32, #tpu.memory_space<vmem>>, vector<32x384xf32>,
    %c0_i32_8 = arith.constant 0 : i32
    %9 = arith.cmpi eq, %arg2, %c0_i32_8 : i32
    %10 = arith.extui %9 : i1 to i32
    %c0_i32_9 = arith.constant 0 : i32
    %11 = arith.cmpi ne, %10, %c0_i32_9 : i32
    scf.if %11 {
      %c0_10 = arith.constant 0 : index
      %c0_11 = arith.constant 0 : index
      %12 = vector.load %arg7[%c0_10, %c0_11] : memref<32x384xf32, #tpu.memory_space<vmem>>, vector<32x384xf32>
      %c0_12 = arith.constant 0 : index
      %c0_13 = arith.constant 0 : index
      %13 = vector.load %arg5[%c0_12, %c0_13] : memref<1x384xf32, #tpu.memory_space<vmem>>, vector<1x384xf32>
      %14 = vector.broadcast %13 : vector<1x384xf32> to vector<32x384xf32>
      %15 = arith.addf %12, %14 : vector<32x384xf32>
      %16 = arith.truncf %15 : vector<32x384xf32> to vector<32x384xbf16>
      %c0_14 = arith.constant 0 : index
      %c0_15 = arith.constant 0 : index
      %17 = vector.load %arg6[%c0_14, %c0_15] : memref<32x384xbf16, #tpu.memory_space<vmem>>, vector<32x384xbf16>
      tpu.vector_store %arg6[%c0_14, %c0_15], %16 {strides = array<i32>} : memref<32x384xbf16, #tpu.memory_space<vmem>>, vector<32x384xbf16>,
    } else {
    }
    return
  }
  func.func @transform_0(%arg0: i32, %arg1: i32, %arg2: i32) -> (i32, i32) {
    %c0_i32 = arith.constant 0 : i32
    return %arg0, %arg2 : i32, i32
  }
  func.func @transform_1(%arg0: i32, %arg1: i32, %arg2: i32) -> (i32, i32) {
    %c0_i32 = arith.constant 0 : i32
    return %arg2, %arg1 : i32, i32
  }
  func.func @transform_2(%arg0: i32, %arg1: i32, %arg2: i32) -> (i32, i32) {
    %c0_i32 = arith.constant 0 : i32
    %c0_i32_0 = arith.constant 0 : i32
    return %c0_i32, %arg1 : i32, i32
  }
  func.func @transform_3(%arg0: i32, %arg1: i32, %arg2: i32) -> (i32, i32) {
    %c0_i32 = arith.constant 0 : i32
    return %arg0, %arg1 : i32, i32
  }
}

</mosaic_0001>

<llo_original>
// kernel: tpu_custom_call.1
$region0: #{tpu_custom_call.1}
  #allocation0 [shape = 'u32[]', space=smem, size = 0x4, offset = 0x4, fixed_abs, tag = 'smem constant byte address 0x4 - core index']
  #allocation1 [shape = 'u32[144,128]{1,0:T(1,128)}', space=vmem, size = 0x12000, scoped, tag = 'internal scratch']
  #allocation2 [shape = 'f32[32,384]{1,0:T(8,128)}', space=vmem, size = 0xc000, scoped, tag = 'scratch operand']
  %s0 = inlined_call_operand.hbm [shape: bf16[32,128], index: 0, kind: input, shape index: {}]
  %s1 = inlined_call_operand.hbm [shape: bf16[128,384], index: 1, kind: input, shape index: {}]
  %s2 = inlined_call_operand.vmem [shape: f32[1,384], index: 2, kind: input, shape index: {}]
  %s3 = inlined_call_operand.hbm [shape: bf16[32,384], index: 3, kind: output, shape index: {}]
  %s4 = sld [smem:[#allocation0]]
  $region38: #{tpu_custom_call.1} parent=0
    _
  %s6 = ssub.s32 1, %s4
  %s7 = scalar_select 0, %s6, %s4
  $region1: #{tpu_custom_call.1} parent=0
    #allocation3 [shape = 'u8[8192]{0}', space=vmem, size = 0x2000, scoped, tag = 'input window, operand 0, single buffered']
    #allocation4 [shape = 's32[1]{0}', space=sflag, size = 0x4, scoped, tag = 'scoped memory for tpu_custom_call.1']
    #allocation5 [shape = 's32[1]{0}', space=sflag, size = 0x4, scoped, tag = 'scoped memory for tpu_custom_call.1']
    #allocation6 [shape = 'u8[98304]{0}', space=vmem, size = 0x18000, scoped, tag = 'input window, operand 1, single buffered']
    #allocation7 [shape = 's32[1]{0}', space=sflag, size = 0x4, scoped, tag = 'scoped memory for tpu_custom_call.1']
    #allocation8 [shape = 'u8[24576]{0}', space=vmem, size = 0x6000, scoped, tag = 'output window, operand 0, single buffered']
    %8 = vsyncpa [#allocation4], 0
    %9 = vsyncpa [#allocation7], 0
    %10 = vsyncpa [#allocation5], 0
    // Predicated region
    $region2: #{tpu_custom_call.1} parent=1 // pred_check
      _
    $region3: #{tpu_custom_call.1} parent=1 // pred_check_branch
      %12 = sbr.rel (0) target = $region5
    $region4: #{tpu_custom_call.1} parent=1 // pred_region
      %s14 = ssub.s32 256, 256
      %15 = vsyncadd [#allocation4], %s14
      %s16 = sshll.u32 [#allocation3], 4
      %s17 = int_to_ptr.vmem [resolvable:$true] %s16
      %22 = dma.hbm_to_vmem [thread:$0]  %s0, 256, %s17, [#allocation4], 64, 64, 4
    $region5: #{tpu_custom_call.1} parent=1 // pred_fallthru
      _
    // Predicated region
    $region6: #{tpu_custom_call.1} parent=1 // pred_check
      _
    $region7: #{tpu_custom_call.1} parent=1 // pred_check_branch
      %24 = sbr.rel (0) target = $region9
    $region8: #{tpu_custom_call.1} parent=1 // pred_region
      %s26 = ssub.s32 3072, 3072
      %27 = vsyncadd [#allocation7], %s26
      %s28 = sshll.u32 [#allocation6], 4
      %s29 = int_to_ptr.vmem [resolvable:$true] %s28
      %34 = dma.hbm_to_vmem [thread:$0]  %s1, 3072, %s29, [#allocation7], 192, 192, 12
    $region9: #{tpu_custom_call.1} parent=1 // pred_fallthru
      _
    // Predicated region
    $region10: #{tpu_custom_call.1} parent=1 // pred_check
      _
    $region11: #{tpu_custom_call.1} parent=1 // pred_check_branch
      %36 = sbr.rel (0) target = $region13
    $region12: #{tpu_custom_call.1} parent=1 // pred_region
      _
    $region13: #{tpu_custom_call.1} parent=1 // pred_fallthru
      _
    // Predicated region
    $region14: #{tpu_custom_call.1} parent=1 // pred_check
      _
    $region15: #{tpu_custom_call.1} parent=1 // pred_check_branch
      %38 = sbr.rel (0) target = $region17
    $region16: #{tpu_custom_call.1} parent=1 // pred_region
      %39 = dma.done [#allocation4], 256
    $region17: #{tpu_custom_call.1} parent=1 // pred_fallthru
      _
    // Predicated region
    $region18: #{tpu_custom_call.1} parent=1 // pred_check
      _
    $region19: #{tpu_custom_call.1} parent=1 // pred_check_branch
      %41 = sbr.rel (0) target = $region21
    $region20: #{tpu_custom_call.1} parent=1 // pred_region
      %42 = dma.done [#allocation7], 3072
    $region21: #{tpu_custom_call.1} parent=1 // pred_fallthru
      _
    %p44 = scmp.eq.s32.totalorder 0, 0
    // Predicated region
    $region22: #{tpu_custom_call.1} parent=1 // pred_check
      %p45 = pneg %p44
    $region23: #{tpu_custom_call.1} parent=1 // pred_check_branch
      %47 = sbr.rel (%p45) target = $region25
    $region24: #{tpu_custom_call.1} parent=1 // pred_region
      %48 = vst [vmem:[#allocation2] sm:$0xff] 0.0
      %49 = vst [vmem:[#allocation2 + $0x8] sm:$0xff] 0.0
      %50 = vst [vmem:[#allocation2 + $0x10] sm:$0xff] 0.0
      %51 = vst [vmem:[#allocation2 + $0x18] sm:$0xff] 0.0
      %52 = vst [vmem:[#allocation2 + $0x20] sm:$0xff] 0.0
      %53 = vst [vmem:[#allocation2 + $0x28] sm:$0xff] 0.0
      %54 = vst [vmem:[#allocation2 + $0x30] sm:$0xff] 0.0
      %55 = vst [vmem:[#allocation2 + $0x38] sm:$0xff] 0.0
      %56 = vst [vmem:[#allocation2 + $0x40] sm:$0xff] 0.0
      %57 = vst [vmem:[#allocation2 + $0x48] sm:$0xff] 0.0
      %58 = vst [vmem:[#allocation2 + $0x50] sm:$0xff] 0.0
      %59 = vst [vmem:[#allocation2 + $0x58] sm:$0xff] 0.0
    $region25: #{tpu_custom_call.1} parent=1 // pred_fallthru
      _
    %v60 = vld [vmem:[#allocation2] sm:$0xff]
    %v61 = vld [vmem:[#allocation2 + $0x8] sm:$0xff]
    %v62 = vld [vmem:[#allocation2 + $0x10] sm:$0xff]
    %v63 = vld [vmem:[#allocation2 + $0x18] sm:$0xff]
    %v64 = vld [vmem:[#allocation2 + $0x20] sm:$0xff]
    %v65 = vld [vmem:[#allocation2 + $0x28] sm:$0xff]
    %v66 = vld [vmem:[#allocation2 + $0x30] sm:$0xff]
    %v67 = vld [vmem:[#allocation2 + $0x38] sm:$0xff]
    %v68 = vld [vmem:[#allocation2 + $0x40] sm:$0xff]
    %v69 = vld [vmem:[#allocation2 + $0x48] sm:$0xff]
    %v70 = vld [vmem:[#allocation2 + $0x50] sm:$0xff]
    %v71 = vld [vmem:[#allocation2 + $0x58] sm:$0xff]
    %v72 = vld [vmem:[#allocation3] sm:$0xf]
    %v73 = vld [vmem:[#allocation3 + $0x4] sm:$0xf]
    %v74 = vld [vmem:[#allocation3 + $0x8] sm:$0xf]
    %v75 = vld [vmem:[#allocation3 + $0xc] sm:$0xf]
    %v76 = vld [vmem:[#allocation6] sm:$0xff]
    %v77 = vld [vmem:[#allocation6 + $0x8] sm:$0xf]
    %v78 = vld [vmem:[#allocation6 + $0xc] sm:$0xff]
    %v79 = vld [vmem:[#allocation6 + $0x14] sm:$0xf]
    %v80 = vld [vmem:[#allocation6 + $0x18] sm:$0xff]
    %v81 = vld [vmem:[#allocation6 + $0x20] sm:$0xf]
    %v82 = vld [vmem:[#allocation6 + $0x24] sm:$0xff]
    %v83 = vld [vmem:[#allocation6 + $0x2c] sm:$0xf]
    %v84 = vld [vmem:[#allocation6 + $0x30] sm:$0xff]
    %v85 = vld [vmem:[#allocation6 + $0x38] sm:$0xf]
    %v86 = vld [vmem:[#allocation6 + $0x3c] sm:$0xff]
    %v87 = vld [vmem:[#allocation6 + $0x44] sm:$0xf]
    %v88 = vld [vmem:[#allocation6 + $0x48] sm:$0xff]
    %v89 = vld [vmem:[#allocation6 + $0x50] sm:$0xf]
    %v90 = vld [vmem:[#allocation6 + $0x54] sm:$0xff]
    %v91 = vld [vmem:[#allocation6 + $0x5c] sm:$0xf]
    %v92 = vld [vmem:[#allocation6 + $0x60] sm:$0xff]
    %v93 = vld [vmem:[#allocation6 + $0x68] sm:$0xf]
    %v94 = vld [vmem:[#allocation6 + $0x6c] sm:$0xff]
    %v95 = vld [vmem:[#allocation6 + $0x74] sm:$0xf]
    %v96 = vld [vmem:[#allocation6 + $0x78] sm:$0xff]
    %v97 = vld [vmem:[#allocation6 + $0x80] sm:$0xf]
    %v98 = vld [vmem:[#allocation6 + $0x84] sm:$0xff]
    %v99 = vld [vmem:[#allocation6 + $0x8c] sm:$0xf]
    %v100 = vld [vmem:[#allocation6 + $0x90] sm:$0xff]
    %v101 = vld [vmem:[#allocation6 + $0x98] sm:$0xf]
    %v102 = vld [vmem:[#allocation6 + $0x9c] sm:$0xff]
    %v103 = vld [vmem:[#allocation6 + $0xa4] sm:$0xf]
    %v104 = vld [vmem:[#allocation6 + $0xa8] sm:$0xff]
    %v105 = vld [vmem:[#allocation6 + $0xb0] sm:$0xf]
    %v106 = vld [vmem:[#allocation6 + $0xb4] sm:$0xff]
    %v107 = vld [vmem:[#allocation6 + $0xbc] sm:$0xf]
    %v112 = vunpack.c.l.b16 %v72
    %v113 = vunpack.c.l.b16 %v73
    %v114 = vunpack.c.l.b16 %v74
    %v115 = vunpack.c.l.b16 %v75
    %v116 = vpack.c.b16 %v113, %v112
    %v117 = vpack.c.b16 %v115, %v114
    %v152 = vunpack.c.l.b16 %v76
    %v153 = vunpack.c.h.b16 %v76
    %v154 = vunpack.c.l.b16 %v77
    %v155 = vunpack.c.l.b16 %v78
    %v156 = vunpack.c.h.b16 %v78
    %v157 = vunpack.c.l.b16 %v79
    %v158 = vunpack.c.l.b16 %v80
    %v159 = vunpack.c.h.b16 %v80
    %v160 = vunpack.c.l.b16 %v81
    %v161 = vunpack.c.l.b16 %v82
    %v162 = vunpack.c.h.b16 %v82
    %v163 = vunpack.c.l.b16 %v83
    %v164 = vunpack.c.l.b16 %v84
    %v165 = vunpack.c.h.b16 %v84
    %v166 = vunpack.c.l.b16 %v85
    %v167 = vunpack.c.l.b16 %v86
    %v168 = vunpack.c.h.b16 %v86
    %v169 = vunpack.c.l.b16 %v87
    %v170 = vunpack.c.l.b16 %v88
    %v171 = vunpack.c.h.b16 %v88
    %v172 = vunpack.c.l.b16 %v89
    %v173 = vunpack.c.l.b16 %v90
    %v174 = vunpack.c.h.b16 %v90
    %v175 = vunpack.c.l.b16 %v91
    %v176 = vunpack.c.l.b16 %v92
    %v177 = vunpack.c.h.b16 %v92
    %v178 = vunpack.c.l.b16 %v93
    %v179 = vunpack.c.l.b16 %v94
    %v180 = vunpack.c.h.b16 %v94
    %v181 = vunpack.c.l.b16 %v95
    %v182 = vunpack.c.l.b16 %v96
    %v183 = vunpack.c.h.b16 %v96
    %v184 = vunpack.c.l.b16 %v97
    %v185 = vunpack.c.l.b16 %v98
    %v186 = vunpack.c.h.b16 %v98
    %v187 = vunpack.c.l.b16 %v99
    %v188 = vunpack.c.l.b16 %v100
    %v189 = vunpack.c.h.b16 %v100
    %v190 = vunpack.c.l.b16 %v101
    %v191 = vunpack.c.l.b16 %v102
    %v192 = vunpack.c.h.b16 %v102
    %v193 = vunpack.c.l.b16 %v103
    %v194 = vunpack.c.l.b16 %v104
    %v195 = vunpack.c.h.b16 %v104
    %v196 = vunpack.c.l.b16 %v105
    %v197 = vunpack.c.l.b16 %v106
    %v198 = vunpack.c.h.b16 %v106
    %v199 = vunpack.c.l.b16 %v107
    %v200 = vpack.c.b16 %v155, %v152
    %v201 = vpack.c.b16 %v156, %v153
    %v202 = vpack.c.b16 %v157, %v154
    %v203 = vpack.c.b16 %v161, %v158
    %v204 = vpack.c.b16 %v162, %v159
    %v205 = vpack.c.b16 %v163, %v160
    %v206 = vpack.c.b16 %v167, %v164
    %v207 = vpack.c.b16 %v168, %v165
    %v208 = vpack.c.b16 %v169, %v166
    %v209 = vpack.c.b16 %v173, %v170
    %v210 = vpack.c.b16 %v174, %v171
    %v211 = vpack.c.b16 %v175, %v172
    %v212 = vpack.c.b16 %v179, %v176
    %v213 = vpack.c.b16 %v180, %v177
    %v214 = vpack.c.b16 %v181, %v178
    %v215 = vpack.c.b16 %v185, %v182
    %v216 = vpack.c.b16 %v186, %v183
    %v217 = vpack.c.b16 %v187, %v184
    %v218 = vpack.c.b16 %v191, %v188
    %v219 = vpack.c.b16 %v192, %v189
    %v220 = vpack.c.b16 %v193, %v190
    %v221 = vpack.c.b16 %v197, %v194
    %v222 = vpack.c.b16 %v198, %v195
    %v223 = vpack.c.b16 %v199, %v196
    %248 = vmatprep.subr.bf16.mxu0 %v222
    %249 = vmatpush1.bf16.msra.mxu0 %v221
    %250 = vmatprep.subr.bf16.mxu0 %v219
    %251 = vmatpush1.bf16.msra.mxu0 %v218
    %252 = vmatprep.subr.bf16.mxu0 %v216
    %253 = vmatpush1.bf16.msra.mxu0 %v215
    %254 = vmatprep.subr.bf16.mxu0 %v213
    %255 = vmatpush1.bf16.msra.mxu0 %v212
    %256 = vmatprep.subr.bf16.mxu0 %v210
    %257 = vmatpush1.bf16.msra.mxu0 %v209
    %258 = vmatprep.subr.bf16.mxu0 %v207
    %259 = vmatpush1.bf16.msra.mxu0 %v206
    %260 = vmatprep.subr.bf16.mxu0 %v204
    %261 = vmatpush1.bf16.msra.mxu0 %v203
    %262 = vmatprep.subr.bf16.mxu0 %v201
    %263 = vmatpush1.bf16.msra.mxu0 %v200
    %264 = vmatprep.subr.bf16.mxu0 0
    %265 = vmatpush2.bf16.msra.mxu0 0
    %266 = vmatprep.subr.bf16.mxu0 0
    %267 = vmatpush2.bf16.msra.mxu0 0
    %268 = vmatprep.subr.bf16.mxu0 0
    %269 = vmatpush2.bf16.msra.mxu0 0
    %270 = vmatprep.subr.bf16.mxu0 0
    %271 = vmatpush2.bf16.msra.mxu0 0
    %272 = vmatprep.subr.bf16.mxu0 0
    %273 = vmatpush2.bf16.msra.mxu0 0
    %274 = vmatprep.subr.bf16.mxu0 0
    %275 = vmatpush2.bf16.msra.mxu0 0
    %276 = vmatprep.subr.bf16.mxu0 0
    %277 = vmatpush2.bf16.msra.mxu0 0
    %278 = vmatprep.subr.bf16.mxu0 0
    %279 = vmatpush2.bf16.msra.mxu0 0
    %280 = vmatprep.mubr.bf16.mxu0 0
    %281 = vmatmul.mubr.bf16.gmra.mxu0 %v116
    %v282 = vpop.f32.mrf.mxu0
    %v283 = vadd.f32 0.0, %v282
    %v284 = vpop.f32.mrf.mxu0
    %v285 = vadd.f32 0.0, %v284
    %v286 = vpop.f32.mrf.mxu0
    %v287 = vadd.f32 0.0, %v286
    %v288 = vpop.f32.mrf.mxu0
    %v289 = vadd.f32 0.0, %v288
    %290 = vmatprep.mubr.bf16.mxu0 0
    %291 = vmatmul.mubr.bf16.gmra.mxu0 %v117
    %v292 = vpop.f32.mrf.mxu0
    %v293 = vadd.f32 0.0, %v292
    %v294 = vpop.f32.mrf.mxu0
    %v295 = vadd.f32 0.0, %v294
    %v296 = vpop.f32.mrf.mxu0
    %v297 = vadd.f32 0.0, %v296
    %v298 = vpop.f32.mrf.mxu0
    %v299 = vadd.f32 0.0, %v298
    %300 = vdwg.mxu0
    %301 = vmatprep.subr.bf16.mxu0 0
    %302 = vmatpush1.bf16.msra.mxu0 %v223
    %303 = vmatprep.subr.bf16.mxu0 0
    %304 = vmatpush1.bf16.msra.mxu0 %v220
    %305 = vmatprep.subr.bf16.mxu0 0
    %306 = vmatpush1.bf16.msra.mxu0 %v217
    %307 = vmatprep.subr.bf16.mxu0 0
    %308 = vmatpush1.bf16.msra.mxu0 %v214
    %309 = vmatprep.subr.bf16.mxu0 0
    %310 = vmatpush1.bf16.msra.mxu0 %v211
    %311 = vmatprep.subr.bf16.mxu0 0
    %312 = vmatpush1.bf16.msra.mxu0 %v208
    %313 = vmatprep.subr.bf16.mxu0 0
    %314 = vmatpush1.bf16.msra.mxu0 %v205
    %315 = vmatprep.subr.bf16.mxu0 0
    %316 = vmatpush1.bf16.msra.mxu0 %v202
    %317 = vmatprep.subr.bf16.mxu0 0
    %318 = vmatpush2.bf16.msra.mxu0 0
    %319 = vmatprep.subr.bf16.mxu0 0
    %320 = vmatpush2.bf16.msra.mxu0 0
    %321 = vmatprep.subr.bf16.mxu0 0
    %322 = vmatpush2.bf16.msra.mxu0 0
    %323 = vmatprep.subr.bf16.mxu0 0
    %324 = vmatpush2.bf16.msra.mxu0 0
    %325 = vmatprep.subr.bf16.mxu0 0
    %326 = vmatpush2.bf16.msra.mxu0 0
    %327 = vmatprep.subr.bf16.mxu0 0
    %328 = vmatpush2.bf16.msra.mxu0 0
    %329 = vmatprep.subr.bf16.mxu0 0
    %330 = vmatpush2.bf16.msra.mxu0 0
    %331 = vmatprep.subr.bf16.mxu0 0
    %332 = vmatpush2.bf16.msra.mxu0 0
    %333 = vmatprep.mubr.bf16.mxu0 0
    %334 = vmatmul.mubr.bf16.gmra.mxu0 %v116
    %v335 = vpop.f32.mrf.mxu0
    %v336 = vadd.f32 0.0, %v335
    %v337 = vpop.f32.mrf.mxu0
    %v338 = vpop.f32.mrf.mxu0
    %v339 = vadd.f32 0.0, %v338
    %v340 = vpop.f32.mrf.mxu0
    %341 = vmatprep.mubr.bf16.mxu0 0
    %342 = vmatmul.mubr.bf16.gmra.mxu0 %v117
    %v343 = vpop.f32.mrf.mxu0
    %v344 = vadd.f32 0.0, %v343
    %v345 = vpop.f32.mrf.mxu0
    %v346 = vpop.f32.mrf.mxu0
    %v347 = vadd.f32 0.0, %v346
    %v348 = vpop.f32.mrf.mxu0
    %349 = vdwg.mxu0
    %v350 = vadd.f32 %v60, %v283
    %v351 = vadd.f32 %v61, %v285
    %v352 = vadd.f32 %v62, %v336
    %v353 = vadd.f32 %v63, %v287
    %v354 = vadd.f32 %v64, %v289
    %v355 = vadd.f32 %v65, %v339
    %v356 = vadd.f32 %v66, %v293
    %v357 = vadd.f32 %v67, %v295
    %v358 = vadd.f32 %v68, %v344
    %v359 = vadd.f32 %v69, %v297
    %v360 = vadd.f32 %v70, %v299
    %v361 = vadd.f32 %v71, %v347
    %362 = vst [vmem:[#allocation2] sm:$0xff] %v350
    %363 = vst [vmem:[#allocation2 + $0x8] sm:$0xff] %v351
    %364 = vst [vmem:[#allocation2 + $0x10] sm:$0xff] %v352
    %365 = vst [vmem:[#allocation2 + $0x18] sm:$0xff] %v353
    %366 = vst [vmem:[#allocation2 + $0x20] sm:$0xff] %v354
    %367 = vst [vmem:[#allocation2 + $0x28] sm:$0xff] %v355
    %368 = vst [vmem:[#allocation2 + $0x30] sm:$0xff] %v356
    %369 = vst [vmem:[#allocation2 + $0x38] sm:$0xff] %v357
    %370 = vst [vmem:[#allocation2 + $0x40] sm:$0xff] %v358
    %371 = vst [vmem:[#allocation2 + $0x48] sm:$0xff] %v359
    %372 = vst [vmem:[#allocation2 + $0x50] sm:$0xff] %v360
    %373 = vst [vmem:[#allocation2 + $0x58] sm:$0xff] %v361
    // Predicated region
    $region26: #{tpu_custom_call.1} parent=1 // pred_check
      %p374 = pneg %p44
    $region27: #{tpu_custom_call.1} parent=1 // pred_check_branch
      %376 = sbr.rel (%p374) target = $region29
    $region28: #{tpu_custom_call.1} parent=1 // pred_region
      %v377 = vld [vmem:[#allocation2] sm:$0xff]
      %v378 = vld [vmem:[#allocation2 + $0x8] sm:$0xff]
      %v379 = vld [vmem:[#allocation2 + $0x10] sm:$0xff]
      %v380 = vld [vmem:[#allocation2 + $0x18] sm:$0xff]
      %v381 = vld [vmem:[#allocation2 + $0x20] sm:$0xff]
      %v382 = vld [vmem:[#allocation2 + $0x28] sm:$0xff]
      %v383 = vld [vmem:[#allocation2 + $0x30] sm:$0xff]
      %v384 = vld [vmem:[#allocation2 + $0x38] sm:$0xff]
      %v385 = vld [vmem:[#allocation2 + $0x40] sm:$0xff]
      %v386 = vld [vmem:[#allocation2 + $0x48] sm:$0xff]
      %v387 = vld [vmem:[#allocation2 + $0x50] sm:$0xff]
      %v388 = vld [vmem:[#allocation2 + $0x58] sm:$0xff]
      %v389 = vld [vmem:[%s2] sm:$0x7]
      %v391 = vlaneseq
      %v392 = vshrl.u32 %v391, 7
      %v393 = vsub.s32 0, %v392
      %v394 = vrot.slane %v389, %v393
      %v395 = vlaneseq
      %v396 = vshrl.u32 %v395, 7
      %v397 = vsub.s32 1, %v396
      %v398 = vrot.slane %v389, %v397
      %v399 = vlaneseq
      %v400 = vshrl.u32 %v399, 7
      %v401 = vsub.s32 2, %v400
      %v402 = vrot.slane %v389, %v401
      %v406 = vadd.f32 %v377, %v394
      %v407 = vadd.f32 %v378, %v398
      %v408 = vadd.f32 %v379, %v402
      %v409 = vadd.f32 %v380, %v394
      %v410 = vadd.f32 %v381, %v398
      %v411 = vadd.f32 %v382, %v402
      %v412 = vadd.f32 %v383, %v394
      %v413 = vadd.f32 %v384, %v398
      %v414 = vadd.f32 %v385, %v402
      %v415 = vadd.f32 %v386, %v394
      %v416 = vadd.f32 %v387, %v398
      %v417 = vadd.f32 %v388, %v402
      %v418 = vpack.c.bf16 %v409, %v406
      %v419 = vpack.c.bf16 %v410, %v407
      %v420 = vpack.c.bf16 %v411, %v408
      %v421 = vpack.c.bf16 %v415, %v412
      %v422 = vpack.c.bf16 %v416, %v413
      %v423 = vpack.c.bf16 %v417, %v414
      %v430 = vunpack.c.l.b16 %v418
      %v431 = vunpack.c.l.b16 %v419
      %v432 = vunpack.c.l.b16 %v420
      %v433 = vunpack.c.h.b16 %v418
      %v434 = vunpack.c.h.b16 %v419
      %v435 = vunpack.c.h.b16 %v420
      %v436 = vunpack.c.l.b16 %v421
      %v437 = vunpack.c.l.b16 %v422
      %v438 = vunpack.c.l.b16 %v423
      %v439 = vunpack.c.h.b16 %v421
      %v440 = vunpack.c.h.b16 %v422
      %v441 = vunpack.c.h.b16 %v423
      %v442 = vpack.c.b16 %v431, %v430
      %v443 = vpack.c.b16 %v432, %v432
      %v444 = vpack.c.b16 %v434, %v433
      %v445 = vpack.c.b16 %v435, %v435
      %v446 = vpack.c.b16 %v437, %v436
      %v447 = vpack.c.b16 %v438, %v438
      %v448 = vpack.c.b16 %v440, %v439
      %v449 = vpack.c.b16 %v441, %v441
      %458 = vst [vmem:[#allocation8] sm:$0xff] %v442
      %459 = vst [vmem:[#allocation8 + $0x8] sm:$0xf] %v443
      %460 = vst [vmem:[#allocation8 + $0xc] sm:$0xff] %v444
      %461 = vst [vmem:[#allocation8 + $0x14] sm:$0xf] %v445
      %462 = vst [vmem:[#allocation8 + $0x18] sm:$0xff] %v446
      %463 = vst [vmem:[#allocation8 + $0x20] sm:$0xf] %v447
      %464 = vst [vmem:[#allocation8 + $0x24] sm:$0xff] %v448
      %465 = vst [vmem:[#allocation8 + $0x2c] sm:$0xf] %v449
    $region29: #{tpu_custom_call.1} parent=1 // pred_fallthru
      _
    // Predicated region
    $region30: #{tpu_custom_call.1} parent=1 // pred_check
      _
    $region31: #{tpu_custom_call.1} parent=1 // pred_check_branch
      %467 = sbr.rel (0) target = $region33
    $region32: #{tpu_custom_call.1} parent=1 // pred_region
      %s469 = ssub.s32 768, 768
      %470 = vsyncadd [#allocation5], %s469
      %s471 = sshll.u32 [#allocation8], 4
      %s472 = int_to_ptr.vmem [resolvable:$true] %s471
      %477 = dma.vmem_to_hbm [thread:$0]  %s472, 768, %s3, [#allocation5], 192, 192, 12
    $region33: #{tpu_custom_call.1} parent=1 // pred_fallthru
      _
    // Predicated region
    $region34: #{tpu_custom_call.1} parent=1 // pred_check
      _
    $region35: #{tpu_custom_call.1} parent=1 // pred_check_branch
      %479 = sbr.rel (0) target = $region37
    $region36: #{tpu_custom_call.1} parent=1 // pred_region
      %480 = dma.done [#allocation5], 768
    $region37: #{tpu_custom_call.1} parent=1 // pred_fallthru
      _
    %481 = vsyncpa [#allocation4], 1
    %482 = vsyncpa [#allocation7], 1
    %483 = vsyncpa [#allocation5], 1

</llo_original>
